<compile_context>
chip_gen: v7x
topology: tpu7x:2x2x1
jax: 0.10.0
libtpu: 0.0.40
codegen_flags: <defaults>
</compile_context>

<pallas_src>
import math

import jax
import jax.numpy as jnp
from jax.experimental import pallas as pl
from jax.experimental.pallas import tpu as pltpu

_MIB = 1024 * 1024
_MAX_TILE_LANES = 32768


# ---------------------------------------------------------------------------
# Kernels
# ---------------------------------------------------------------------------
def _prelu_scalar_kernel(x_ref, w_ref, y_ref):
    """Shared-slope PReLU on a lane-dense f32 tile.

    x_ref : (tile_r, tile_c) f32 VMEM tile (real/imag interleaved)
    w_ref : (1, 1) f32 SMEM scalar slope
    """
    w = w_ref[0, 0]
    x = x_ref[...]
    y_ref[...] = jnp.where(x > 0, x, x * w)


def _prelu_rowwise_kernel(x_ref, w_ref, y_ref):
    """Per-channel PReLU: one slope per row (per (n, c) pair).

    x_ref : (tile_r, tile_c) f32 VMEM tile
    w_ref : (tile_r, 1) f32 VMEM column, broadcasts over lanes
    """
    w = w_ref[...]
    x = x_ref[...]
    y_ref[...] = jnp.where(x > 0, x, x * w)


# ---------------------------------------------------------------------------
# Tiling helpers
# ---------------------------------------------------------------------------
def _round_up(x, m):
    return ((x + m - 1) // m) * m


def _tile_target_bytes():
    """Generation-aware f32 input-tile byte target."""
    try:
        kind = jax.devices()[0].device_kind.lower()
    except Exception:  # pragma: no cover - defensive (interpret / CPU)
        kind = ""
    if "v7" in kind:
        return 6 * _MIB   # 3.2 TB/s HBM: amortize ~0.35us per-step overhead
    if "v6" in kind:
        return 4 * _MIB
    return 2 * _MIB       # v5e and unknown backends


def _pick_block(rows, cols, target_bytes):
    """Pick (tile_r, tile_c) obeying the (8, 128) rule without divisor cliffs.

    Blocks are either full-extent or (multiple-of-8, multiple-of-128); the
    grid uses pl.cdiv so partial edge blocks are handled by the pipeline.
    """
    # Lane (last) axis: full extent when modest, else a big multiple of 128.
    tile_c = cols if cols <= _MAX_TILE_LANES else _MAX_TILE_LANES

    # Sublane axis: aim for the byte target (multiple of 8), cap at full rows.
    want_r = max(8, (target_bytes // (tile_c * 4)) // 8 * 8)
    tile_r = rows if rows <= want_r else want_r

    # v7x has 2 TensorCores: make sure the "parallel" grid has >= 2 steps so
    # both cores get work (harmless no-op on single-TC v5e/v6e).
    if pl.cdiv(rows, tile_r) * pl.cdiv(cols, tile_c) < 2 and rows >= 16:
        tile_r = _round_up(pl.cdiv(rows, 2), 8)
    return tile_r, tile_c


def _vmem_limit_bytes(tile_r, tile_c, rowwise):
    """Explicit scoped-VMEM limit: double-buffered in+out tiles (+ padded
    weight column for the per-channel path) plus slack, capped so it stays
    well inside v7x's 64 MiB physical VMEM."""
    per_buf = 2 * tile_r * tile_c * 4            # input + output tile
    if rowwise:
        per_buf += tile_r * 128 * 4              # lane-padded weight column
    need = 2 * per_buf + 4 * _MIB                # double-buffered + slack
    return int(min(48 * _MIB, max(32 * _MIB, need)))


# ---------------------------------------------------------------------------
# Wrapper
# ---------------------------------------------------------------------------
def complex_prelu(x, weight):
    """Apply ComplexPReLU to a complex64 array `x` (channel axis = dim 1).

    weight: 1-D with num_parameters == 1 or == x.shape[1].
    """
    if x.dtype != jnp.complex64:
        raise TypeError(f"complex_prelu expects complex64 input, got {x.dtype}")
    if x.ndim < 1:
        raise ValueError("complex_prelu expects at least a 1-D input")

    shape = tuple(int(d) for d in x.shape)
    C = shape[1] if len(shape) >= 2 else 1

    weight = jnp.asarray(weight, dtype=jnp.float32).reshape(-1)
    num_params = int(weight.shape[0])
    if num_params not in (1, C):
        raise ValueError(f"weight must have 1 or {C} elements, got {num_params}")
    if num_params == C and C != 1 and len(shape) < 2:
        raise ValueError("per-channel weights need a channel axis (dim 1)")

    # Interleave real/imag into one f32 buffer -> single fused kernel pass.
    xf_full = jnp.stack([jnp.real(x), jnp.imag(x)], axis=-1)  # (*shape, 2) f32
    total = int(xf_full.size)
    target = _tile_target_bytes()
    cost = pl.CostEstimate(flops=2 * total, transcendentals=0,
                           bytes_accessed=2 * total * 4)

    if num_params == 1:
        # Scalar slope: layout is irrelevant, so pick a lane-dense slab
        # (rows, L) with L a large multiple of 128 dividing the total element
        # count (unmasked full-width stores). Fall back to the channel-major
        # factorization if no such divisor exists.
        L = 0
        for d in range(min(total, _MAX_TILE_LANES), 127, -128):
            if total % d == 0:
                L = d
                break
        if L:
            rows, cols = total // L, L
        else:
            rows = shape[0] * C if len(shape) >= 2 else shape[0]
            cols = total // rows
        xf = xf_full.reshape(rows, cols)

        tile_r, tile_c = _pick_block(rows, cols, target)
        grid = (pl.cdiv(rows, tile_r), pl.cdiv(cols, tile_c))
        data_spec = pl.BlockSpec((tile_r, tile_c), lambda ri, ci: (ri, ci))

        yf = pl.pallas_call(
            _prelu_scalar_kernel,
            out_shape=jax.ShapeDtypeStruct((rows, cols), jnp.float32),
            grid=grid,
            in_specs=[
                data_spec,
                pl.BlockSpec(memory_space=pltpu.MemorySpace.SMEM),
            ],
            out_specs=data_spec,
            compiler_params=pltpu.CompilerParams(
                dimension_semantics=("parallel", "parallel"),
                vmem_limit_bytes=_vmem_limit_bytes(tile_r, tile_c, False)),
            cost_estimate=cost,
        )(xf, weight.reshape(1, 1))
    else:
        # Per-channel slopes: keep the (N*C, spatial*2) factorization so each
        # row maps to a fixed (n, c) pair; slope is a tiny VMEM column whose
        # block index is constant over the inner (column) grid axis.
        N = shape[0]
        rows = N * C
        cols = total // rows
        xf = xf_full.reshape(rows, cols)
        w_rows = jnp.broadcast_to(weight.reshape(1, C), (N, C)).reshape(rows, 1)

        tile_r, tile_c = _pick_block(rows, cols, target)
        grid = (pl.cdiv(rows, tile_r), pl.cdiv(cols, tile_c))
        data_spec = pl.BlockSpec((tile_r, tile_c), lambda ri, ci: (ri, ci))

        yf = pl.pallas_call(
            _prelu_rowwise_kernel,
            out_shape=jax.ShapeDtypeStruct((rows, cols), jnp.float32),
            grid=grid,
            in_specs=[
                data_spec,
                pl.BlockSpec((tile_r, 1), lambda ri, ci: (ri, 0)),
            ],
            out_specs=data_spec,
            compiler_params=pltpu.CompilerParams(
                dimension_semantics=("parallel", "parallel"),
                vmem_limit_bytes=_vmem_limit_bytes(tile_r, tile_c, True)),
            cost_estimate=cost,
        )(xf, w_rows)

    yf_full = yf.reshape(*shape, 2)
    return jax.lax.complex(yf_full[..., 0], yf_full[..., 1])


# ---------------------------------------------------------------------------
# Self-test
# ---------------------------------------------------------------------------
if __name__ == "__main__":
    N, C, H, W = 2, 4, 16, 16

    key = jax.random.PRNGKey(0)
    kr, ki, kw = jax.random.split(key, 3)
    xr = jax.random.normal(kr, (N, C, H, W), dtype=jnp.float32)
    xi = jax.random.normal(ki, (N, C, H, W), dtype=jnp.float32)
    x = jax.lax.complex(xr, xi)  # complex64, NCHW

    def ref_prelu(v, w):
        w_b = jnp.broadcast_to(w.astype(v.dtype), (C,)).reshape(1, C, 1, 1)
        return jnp.where(v > 0, v, v * w_b)

    # Case 1: default module config (num_parameters=1, init=0.25) -> SMEM scalar path.
    w1 = jnp.full((1,), 0.25, dtype=jnp.float32)
    out1 = jax.block_until_ready(complex_prelu(x, w1))
    ref1 = jax.lax.complex(ref_prelu(xr, w1), ref_prelu(xi, w1))
    assert out1.shape == x.shape and out1.dtype == x.dtype
    assert jnp.allclose(out1, ref1, atol=1e-6, rtol=1e-6)

    # Case 2: per-channel slopes (num_parameters=C) -> row-wise VMEM path.
    wc = jax.random.uniform(kw, (C,), dtype=jnp.float32, minval=0.05, maxval=0.5)
    out2 = jax.block_until_ready(complex_prelu(x, wc))
    ref2 = jax.lax.complex(ref_prelu(xr, wc), ref_prelu(xi, wc))
    assert out2.shape == x.shape and out2.dtype == x.dtype
    assert jnp.allclose(out2, ref2, atol=1e-6, rtol=1e-6)

    print("KERNEL_OK")
</pallas_src>

<mosaic_0001>
module attributes {stable_mosaic.version = 11 : i64} {
  func.func @_prelu_scalar_kernel(%arg0: i32, %arg1: i32, %arg2: memref<1x4096xf32, #tpu.memory_space<vmem>>, %arg3: memref<1x1xf32, #tpu.memory_space<smem>>, %arg4: memref<1x4096xf32, #tpu.memory_space<vmem>>) attributes {dimension_semantics = [#tpu.dimension_semantics<parallel>, #tpu.dimension_semantics<parallel>], iteration_bounds = array<i64: 1, 1>, scalar_prefetch = 0 : i64, scratch_operands = 0 : i64, tpu.core_type = #tpu.core_type<tc>, window_params = [{transform_indices = @transform_0, window_bounds = array<i64: 1, 4096>}, {transform_indices = @transform_1, window_bounds = array<i64: 1, 1>}, {transform_indices = @transform_2, window_bounds = array<i64: 1, 4096>}]} {
    %c0 = arith.constant 0 : index
    %c0_0 = arith.constant 0 : index
    %0 = memref.load %arg3[%c0, %c0_0] : memref<1x1xf32, #tpu.memory_space<smem>>
    %c0_1 = arith.constant 0 : index
    %c0_2 = arith.constant 0 : index
    %1 = vector.load %arg2[%c0_1, %c0_2] : memref<1x4096xf32, #tpu.memory_space<vmem>>, vector<1x4096xf32>
    %cst = arith.constant 0.000000e+00 : f32
    %2 = vector.broadcast %cst : f32 to vector<1x4096xf32>
    %3 = arith.cmpf ogt, %1, %2 : vector<1x4096xf32>
    %4 = vector.broadcast %0 : f32 to vector<1x4096xf32>
    %5 = arith.mulf %1, %4 : vector<1x4096xf32>
    %6 = arith.select %3, %1, %5 : vector<1x4096xi1>, vector<1x4096xf32>
    %c0_3 = arith.constant 0 : index
    %c0_4 = arith.constant 0 : index
    %7 = vector.load %arg4[%c0_3, %c0_4] : memref<1x4096xf32, #tpu.memory_space<vmem>>, vector<1x4096xf32>
    tpu.vector_store %arg4[%c0_3, %c0_4], %6 {strides = array<i32>} : memref<1x4096xf32, #tpu.memory_space<vmem>>, vector<1x4096xf32>,
    return
  }
  func.func @transform_0(%arg0: i32, %arg1: i32) -> (i32, i32) {
    %c0_i32 = arith.constant 0 : i32
    return %arg0, %arg1 : i32, i32
  }
  func.func @transform_1(%arg0: i32, %arg1: i32) -> (i32, i32) {
    %c0_i32 = arith.constant 0 : i32
    %c0_i32_0 = arith.constant 0 : i32
    %c0_i32_1 = arith.constant 0 : i32
    return %c0_i32, %c0_i32_0 : i32, i32
  }
  func.func @transform_2(%arg0: i32, %arg1: i32) -> (i32, i32) {
    %c0_i32 = arith.constant 0 : i32
    return %arg0, %arg1 : i32, i32
  }
}

</mosaic_0001>

<llo_original>
// kernel: tpu_custom_call.1
$region0: #{tpu_custom_call.1}
  #allocation0 [shape = 'u32[]', space=smem, size = 0x4, offset = 0x4, fixed_abs, tag = 'smem constant byte address 0x4 - core index']
  #allocation1 [shape = 'u32[144,128]{1,0:T(1,128)}', space=vmem, size = 0x12000, scoped, tag = 'internal scratch']
  #allocation2 [shape = 'f32[1,1]{1,0:T(1,128)S(6)}', space=smem, size = 0x200, scoped, tag = 'scoped memory for tpu_custom_call.1']
  %s0 = inlined_call_operand.hbm [shape: f32[1,4096], index: 0, kind: input, shape index: {}]
  %s1 = inlined_call_operand.<no memory space> [shape: f32[1,1], index: 1, kind: input, shape index: {}]
  %s2 = inlined_call_operand.hbm [shape: f32[1,4096], index: 2, kind: output, shape index: {}]
  %s3 = sld [smem:[#allocation0]]
  $region22: #{tpu_custom_call.1} parent=0
    _
  %s5 = ssub.s32 1, %s3
  %s6 = scalar_select 0, %s5, %s3
  %7 = sst [smem:[#allocation2]] %s1
  $region1: #{tpu_custom_call.1} parent=0
    #allocation3 [shape = 'u8[16384]{0}', space=vmem, size = 0x4000, scoped, tag = 'input window, operand 0, single buffered']
    #allocation4 [shape = 's32[1]{0}', space=sflag, size = 0x4, scoped, tag = 'scoped memory for tpu_custom_call.1']
    #allocation5 [shape = 's32[1]{0}', space=sflag, size = 0x4, scoped, tag = 'scoped memory for tpu_custom_call.1']
    #allocation6 [shape = 'u8[16384]{0}', space=vmem, size = 0x4000, scoped, tag = 'output window, operand 0, single buffered']
    %8 = vsyncpa [#allocation4], 0
    %9 = vsyncpa [#allocation5], 0
    // Predicated region
    $region2: #{tpu_custom_call.1} parent=1 // pred_check
      _
    $region3: #{tpu_custom_call.1} parent=1 // pred_check_branch
      %11 = sbr.rel (0) target = $region5
    $region4: #{tpu_custom_call.1} parent=1 // pred_region
      %s13 = ssub.s32 512, 512
      %14 = vsyncadd [#allocation4], %s13
      %s16 = sshll.u32 [#allocation3], 4
      %s17 = int_to_ptr.vmem [resolvable:$true] %s16
      %19 = dma.hbm_to_vmem [thread:$0]  %s0, 512, %s17, [#allocation4]
    $region5: #{tpu_custom_call.1} parent=1 // pred_fallthru
      _
    // Predicated region
    $region6: #{tpu_custom_call.1} parent=1 // pred_check
      _
    $region7: #{tpu_custom_call.1} parent=1 // pred_check_branch
      %21 = sbr.rel (0) target = $region9
    $region8: #{tpu_custom_call.1} parent=1 // pred_region
      _
    $region9: #{tpu_custom_call.1} parent=1 // pred_fallthru
      _
    // Predicated region
    $region10: #{tpu_custom_call.1} parent=1 // pred_check
      _
    $region11: #{tpu_custom_call.1} parent=1 // pred_check_branch
      %23 = sbr.rel (0) target = $region13
    $region12: #{tpu_custom_call.1} parent=1 // pred_region
      %24 = dma.done [#allocation4], 512
    $region13: #{tpu_custom_call.1} parent=1 // pred_fallthru
      _
    %s25 = sld [smem:[#allocation2]]
    %v26 = vld [vmem:[#allocation3] sm:$0xff]
    %v27 = vld [vmem:[#allocation3 + $0x8] sm:$0xff]
    %v28 = vld [vmem:[#allocation3 + $0x10] sm:$0xff]
    %v29 = vld [vmem:[#allocation3 + $0x18] sm:$0xff]
    %vm30 = vcmp.gt.f32.partialorder %v26, 0.0
    %vm31 = vcmp.gt.f32.partialorder %v27, 0.0
    %vm32 = vcmp.gt.f32.partialorder %v28, 0.0
    %vm33 = vcmp.gt.f32.partialorder %v29, 0.0
    %v34 = vstv %s25
    %v35 = vmul.f32 %v26, %v34
    %v36 = vmul.f32 %v27, %v34
    %v37 = vmul.f32 %v28, %v34
    %v38 = vmul.f32 %v29, %v34
    %v39 = vsel %vm30, %v26, %v35
    %v40 = vsel %vm31, %v27, %v36
    %v41 = vsel %vm32, %v28, %v37
    %v42 = vsel %vm33, %v29, %v38
    %43 = vst [vmem:[#allocation6] sm:$0xff] %v39
    %44 = vst [vmem:[#allocation6 + $0x8] sm:$0xff] %v40
    %45 = vst [vmem:[#allocation6 + $0x10] sm:$0xff] %v41
    %46 = vst [vmem:[#allocation6 + $0x18] sm:$0xff] %v42
    // Predicated region
    $region14: #{tpu_custom_call.1} parent=1 // pred_check
      _
    $region15: #{tpu_custom_call.1} parent=1 // pred_check_branch
      %48 = sbr.rel (0) target = $region17
    $region16: #{tpu_custom_call.1} parent=1 // pred_region
      %s50 = ssub.s32 512, 512
      %51 = vsyncadd [#allocation5], %s50
      %s53 = sshll.u32 [#allocation6], 4
      %s54 = int_to_ptr.vmem [resolvable:$true] %s53
      %56 = dma.vmem_to_hbm [thread:$0]  %s54, 512, %s2, [#allocation5]
    $region17: #{tpu_custom_call.1} parent=1 // pred_fallthru
      _
    // Predicated region
    $region18: #{tpu_custom_call.1} parent=1 // pred_check
      _
    $region19: #{tpu_custom_call.1} parent=1 // pred_check_branch
      %58 = sbr.rel (0) target = $region21
    $region20: #{tpu_custom_call.1} parent=1 // pred_region
      %59 = dma.done [#allocation5], 512
    $region21: #{tpu_custom_call.1} parent=1 // pred_fallthru
      _
    %60 = vsyncpa [#allocation4], 1
    %61 = vsyncpa [#allocation5], 1

</llo_original>
